<compile_context>
chip_gen: v7x
topology: tpu7x:2x2x1
jax: 0.10.0
libtpu: 0.0.40
codegen_flags: <defaults>
</compile_context>

<pallas_src>
from functools import partial

import jax
import jax.numpy as jnp
from jax.experimental import pallas as pl
from jax.experimental.pallas import tpu as pltpu


def modelc_kernel(w_ref, b_ref, x_ref, o_ref):
    """Fused affine map + weighted row-sum on dense (R, 128) blocks.

    w_ref: (12,) SMEM   -- folded weights (W1 @ W2), row-major (4, 3)
    b_ref: (3,)  SMEM   -- folded bias    b1 @ W2 + b2
    x_ref: (7, R, 128) VMEM -- planes 0..3 = dense input features, 4..6 = l
    o_ref: (R, 128)    VMEM -- lane/sublane-dense output
    """
    acc = None
    for k in range(3):                      # 3 folded output features (unrolled)
        yk = b_ref[k] + w_ref[0 * 3 + k] * x_ref[0]
        for j in range(1, 4):               # remaining 3 of 4 input features
            yk = yk + w_ref[j * 3 + k] * x_ref[j]
        term = yk * x_ref[4 + k]            # * l[:, k]
        acc = term if acc is None else acc + term
    o_ref[...] = acc


def _round_up(x, m):
    return (x + m - 1) // m * m


@partial(jax.jit, static_argnames=("block_rows",))
def modelc_forward(inputs, w1, b1, w2, b2, *, block_rows=1024):
    """inputs: (B, 7).  w1: (4,5), b1: (5,), w2: (5,3), b2: (3,)
    (weights stored as (in_features, out_features), i.e. torch weight^T).
    Returns (B,) float32."""
    B = inputs.shape[0]
    f32 = jnp.float32

    # ---- fold the two linear layers (exact: no nonlinearity in between) ----
    w_eff = (w1.astype(f32) @ w2.astype(f32)).reshape(-1)          # (12,)
    b_eff = b1.astype(f32) @ w2.astype(f32) + b2.astype(f32)       # (3,)

    # ---- dense layout: (B, 7) -> (7, nb, 128); batch on lanes+sublanes ----
    b128 = _round_up(B, 128)
    nb = b128 // 128                                               # 128-lane rows
    xt = inputs.astype(f32).T                                      # (7, B)
    if b128 != B:
        xt = jnp.pad(xt, ((0, 0), (0, b128 - B)))                  # pad to 128 only
    xr = xt.reshape(7, nb, 128)                                    # free row-major reshape

    # Rows-of-128 per grid step.  Full array dim if small, else a multiple of 8.
    r = nb if nb <= block_rows else block_rows
    grid = (pl.cdiv(nb, r),)                                       # partial last block OK

    out = pl.pallas_call(
        modelc_kernel,
        out_shape=jax.ShapeDtypeStruct((nb, 128), f32),
        grid=grid,
        in_specs=[
            pl.BlockSpec(memory_space=pltpu.MemorySpace.SMEM),     # w_eff (12,)
            pl.BlockSpec(memory_space=pltpu.MemorySpace.SMEM),     # b_eff (3,)
            pl.BlockSpec((7, r, 128), lambda i: (0, i, 0)),        # input tile
        ],
        out_specs=pl.BlockSpec((r, 128), lambda i: (i, 0)),        # dense out tile
        compiler_params=pltpu.CompilerParams(
            dimension_semantics=("parallel",)),                    # megacore on v7x
    )(w_eff, b_eff, xr)

    return out.reshape(b128)[:B]                                   # fused under jit


def modelc_reference(inputs, w1, b1, w2, b2):
    x = inputs[:, :4]
    l = inputs[:, 4:]
    y = (x @ w1 + b1) @ w2 + b2
    return jnp.sum(y * l, axis=1)


if __name__ == "__main__":
    key = jax.random.PRNGKey(0)
    k_in, k_w1, k_b1, k_w2, k_b2 = jax.random.split(key, 5)

    B = 8  # small batch
    inputs = jax.random.normal(k_in, (B, 7), dtype=jnp.float32)

    # Deterministic parameter init, shapes matching Linear(4,5) / Linear(5,3)
    # stored as (in_features, out_features) with (out_features,) biases.
    w1 = jax.random.uniform(k_w1, (4, 5), dtype=jnp.float32, minval=-0.5, maxval=0.5)
    b1 = jax.random.uniform(k_b1, (5,), dtype=jnp.float32, minval=-0.5, maxval=0.5)
    w2 = jax.random.uniform(k_w2, (5, 3), dtype=jnp.float32, minval=-0.5, maxval=0.5)
    b2 = jax.random.uniform(k_b2, (3,), dtype=jnp.float32, minval=-0.5, maxval=0.5)

    out = modelc_forward(inputs, w1, b1, w2, b2)
    out = jax.block_until_ready(out)

    ref = modelc_reference(inputs, w1, b1, w2, b2)
    assert out.shape == (B,), out.shape
    assert jnp.allclose(out, ref, atol=1e-5, rtol=1e-5), (out, ref)

    print("KERNEL_OK")
</pallas_src>

<mosaic_0001>
module attributes {stable_mosaic.version = 11 : i64} {
  func.func @modelc_kernel(%arg0: i32, %arg1: memref<12xf32, #tpu.memory_space<smem>>, %arg2: memref<3xf32, #tpu.memory_space<smem>>, %arg3: memref<7x1x128xf32, #tpu.memory_space<vmem>>, %arg4: memref<1x128xf32, #tpu.memory_space<vmem>>) attributes {dimension_semantics = [#tpu.dimension_semantics<parallel>], iteration_bounds = array<i64: 1>, scalar_prefetch = 0 : i64, scratch_operands = 0 : i64, tpu.core_type = #tpu.core_type<tc>, window_params = [{transform_indices = @transform_0, window_bounds = array<i64: 12>}, {transform_indices = @transform_1, window_bounds = array<i64: 3>}, {transform_indices = @transform_2, window_bounds = array<i64: 7, 1, 128>}, {transform_indices = @transform_3, window_bounds = array<i64: 1, 128>}]} {
    %c0 = arith.constant 0 : index
    %0 = memref.load %arg2[%c0] : memref<3xf32, #tpu.memory_space<smem>>
    %c0_0 = arith.constant 0 : index
    %1 = memref.load %arg1[%c0_0] : memref<12xf32, #tpu.memory_space<smem>>
    %c0_1 = arith.constant 0 : index
    %c0_2 = arith.constant 0 : index
    %c0_3 = arith.constant 0 : index
    %2 = vector.load %arg3[%c0_1, %c0_2, %c0_3] : memref<7x1x128xf32, #tpu.memory_space<vmem>>, vector<1x1x128xf32>
    %3 = vector.shape_cast %2 : vector<1x1x128xf32> to vector<1x128xf32>
    %4 = vector.broadcast %1 : f32 to vector<1x128xf32>
    %5 = arith.mulf %4, %3 : vector<1x128xf32>
    %6 = vector.broadcast %0 : f32 to vector<1x128xf32>
    %7 = arith.addf %6, %5 : vector<1x128xf32>
    %c3 = arith.constant 3 : index
    %8 = memref.load %arg1[%c3] : memref<12xf32, #tpu.memory_space<smem>>
    %c1 = arith.constant 1 : index
    %c0_4 = arith.constant 0 : index
    %c0_5 = arith.constant 0 : index
    %9 = vector.load %arg3[%c1, %c0_4, %c0_5] : memref<7x1x128xf32, #tpu.memory_space<vmem>>, vector<1x1x128xf32>
    %10 = vector.shape_cast %9 : vector<1x1x128xf32> to vector<1x128xf32>
    %11 = vector.broadcast %8 : f32 to vector<1x128xf32>
    %12 = arith.mulf %11, %10 : vector<1x128xf32>
    %13 = arith.addf %7, %12 : vector<1x128xf32>
    %c6 = arith.constant 6 : index
    %14 = memref.load %arg1[%c6] : memref<12xf32, #tpu.memory_space<smem>>
    %c2 = arith.constant 2 : index
    %c0_6 = arith.constant 0 : index
    %c0_7 = arith.constant 0 : index
    %15 = vector.load %arg3[%c2, %c0_6, %c0_7] : memref<7x1x128xf32, #tpu.memory_space<vmem>>, vector<1x1x128xf32>
    %16 = vector.shape_cast %15 : vector<1x1x128xf32> to vector<1x128xf32>
    %17 = vector.broadcast %14 : f32 to vector<1x128xf32>
    %18 = arith.mulf %17, %16 : vector<1x128xf32>
    %19 = arith.addf %13, %18 : vector<1x128xf32>
    %c9 = arith.constant 9 : index
    %20 = memref.load %arg1[%c9] : memref<12xf32, #tpu.memory_space<smem>>
    %c3_8 = arith.constant 3 : index
    %c0_9 = arith.constant 0 : index
    %c0_10 = arith.constant 0 : index
    %21 = vector.load %arg3[%c3_8, %c0_9, %c0_10] : memref<7x1x128xf32, #tpu.memory_space<vmem>>, vector<1x1x128xf32>
    %22 = vector.shape_cast %21 : vector<1x1x128xf32> to vector<1x128xf32>
    %23 = vector.broadcast %20 : f32 to vector<1x128xf32>
    %24 = arith.mulf %23, %22 : vector<1x128xf32>
    %25 = arith.addf %19, %24 : vector<1x128xf32>
    %c4 = arith.constant 4 : index
    %c0_11 = arith.constant 0 : index
    %c0_12 = arith.constant 0 : index
    %26 = vector.load %arg3[%c4, %c0_11, %c0_12] : memref<7x1x128xf32, #tpu.memory_space<vmem>>, vector<1x1x128xf32>
    %27 = vector.shape_cast %26 : vector<1x1x128xf32> to vector<1x128xf32>
    %28 = arith.mulf %25, %27 : vector<1x128xf32>
    %c1_13 = arith.constant 1 : index
    %29 = memref.load %arg2[%c1_13] : memref<3xf32, #tpu.memory_space<smem>>
    %c1_14 = arith.constant 1 : index
    %30 = memref.load %arg1[%c1_14] : memref<12xf32, #tpu.memory_space<smem>>
    %c0_15 = arith.constant 0 : index
    %c0_16 = arith.constant 0 : index
    %c0_17 = arith.constant 0 : index
    %31 = vector.load %arg3[%c0_15, %c0_16, %c0_17] : memref<7x1x128xf32, #tpu.memory_space<vmem>>, vector<1x1x128xf32>
    %32 = vector.shape_cast %31 : vector<1x1x128xf32> to vector<1x128xf32>
    %33 = vector.broadcast %30 : f32 to vector<1x128xf32>
    %34 = arith.mulf %33, %32 : vector<1x128xf32>
    %35 = vector.broadcast %29 : f32 to vector<1x128xf32>
    %36 = arith.addf %35, %34 : vector<1x128xf32>
    %c4_18 = arith.constant 4 : index
    %37 = memref.load %arg1[%c4_18] : memref<12xf32, #tpu.memory_space<smem>>
    %c1_19 = arith.constant 1 : index
    %c0_20 = arith.constant 0 : index
    %c0_21 = arith.constant 0 : index
    %38 = vector.load %arg3[%c1_19, %c0_20, %c0_21] : memref<7x1x128xf32, #tpu.memory_space<vmem>>, vector<1x1x128xf32>
    %39 = vector.shape_cast %38 : vector<1x1x128xf32> to vector<1x128xf32>
    %40 = vector.broadcast %37 : f32 to vector<1x128xf32>
    %41 = arith.mulf %40, %39 : vector<1x128xf32>
    %42 = arith.addf %36, %41 : vector<1x128xf32>
    %c7 = arith.constant 7 : index
    %43 = memref.load %arg1[%c7] : memref<12xf32, #tpu.memory_space<smem>>
    %c2_22 = arith.constant 2 : index
    %c0_23 = arith.constant 0 : index
    %c0_24 = arith.constant 0 : index
    %44 = vector.load %arg3[%c2_22, %c0_23, %c0_24] : memref<7x1x128xf32, #tpu.memory_space<vmem>>, vector<1x1x128xf32>
    %45 = vector.shape_cast %44 : vector<1x1x128xf32> to vector<1x128xf32>
    %46 = vector.broadcast %43 : f32 to vector<1x128xf32>
    %47 = arith.mulf %46, %45 : vector<1x128xf32>
    %48 = arith.addf %42, %47 : vector<1x128xf32>
    %c10 = arith.constant 10 : index
    %49 = memref.load %arg1[%c10] : memref<12xf32, #tpu.memory_space<smem>>
    %c3_25 = arith.constant 3 : index
    %c0_26 = arith.constant 0 : index
    %c0_27 = arith.constant 0 : index
    %50 = vector.load %arg3[%c3_25, %c0_26, %c0_27] : memref<7x1x128xf32, #tpu.memory_space<vmem>>, vector<1x1x128xf32>
    %51 = vector.shape_cast %50 : vector<1x1x128xf32> to vector<1x128xf32>
    %52 = vector.broadcast %49 : f32 to vector<1x128xf32>
    %53 = arith.mulf %52, %51 : vector<1x128xf32>
    %54 = arith.addf %48, %53 : vector<1x128xf32>
    %c5 = arith.constant 5 : index
    %c0_28 = arith.constant 0 : index
    %c0_29 = arith.constant 0 : index
    %55 = vector.load %arg3[%c5, %c0_28, %c0_29] : memref<7x1x128xf32, #tpu.memory_space<vmem>>, vector<1x1x128xf32>
    %56 = vector.shape_cast %55 : vector<1x1x128xf32> to vector<1x128xf32>
    %57 = arith.mulf %54, %56 : vector<1x128xf32>
    %58 = arith.addf %28, %57 : vector<1x128xf32>
    %c2_30 = arith.constant 2 : index
    %59 = memref.load %arg2[%c2_30] : memref<3xf32, #tpu.memory_space<smem>>
    %c2_31 = arith.constant 2 : index
    %60 = memref.load %arg1[%c2_31] : memref<12xf32, #tpu.memory_space<smem>>
    %c0_32 = arith.constant 0 : index
    %c0_33 = arith.constant 0 : index
    %c0_34 = arith.constant 0 : index
    %61 = vector.load %arg3[%c0_32, %c0_33, %c0_34] : memref<7x1x128xf32, #tpu.memory_space<vmem>>, vector<1x1x128xf32>
    %62 = vector.shape_cast %61 : vector<1x1x128xf32> to vector<1x128xf32>
    %63 = vector.broadcast %60 : f32 to vector<1x128xf32>
    %64 = arith.mulf %63, %62 : vector<1x128xf32>
    %65 = vector.broadcast %59 : f32 to vector<1x128xf32>
    %66 = arith.addf %65, %64 : vector<1x128xf32>
    %c5_35 = arith.constant 5 : index
    %67 = memref.load %arg1[%c5_35] : memref<12xf32, #tpu.memory_space<smem>>
    %c1_36 = arith.constant 1 : index
    %c0_37 = arith.constant 0 : index
    %c0_38 = arith.constant 0 : index
    %68 = vector.load %arg3[%c1_36, %c0_37, %c0_38] : memref<7x1x128xf32, #tpu.memory_space<vmem>>, vector<1x1x128xf32>
    %69 = vector.shape_cast %68 : vector<1x1x128xf32> to vector<1x128xf32>
    %70 = vector.broadcast %67 : f32 to vector<1x128xf32>
    %71 = arith.mulf %70, %69 : vector<1x128xf32>
    %72 = arith.addf %66, %71 : vector<1x128xf32>
    %c8 = arith.constant 8 : index
    %73 = memref.load %arg1[%c8] : memref<12xf32, #tpu.memory_space<smem>>
    %c2_39 = arith.constant 2 : index
    %c0_40 = arith.constant 0 : index
    %c0_41 = arith.constant 0 : index
    %74 = vector.load %arg3[%c2_39, %c0_40, %c0_41] : memref<7x1x128xf32, #tpu.memory_space<vmem>>, vector<1x1x128xf32>
    %75 = vector.shape_cast %74 : vector<1x1x128xf32> to vector<1x128xf32>
    %76 = vector.broadcast %73 : f32 to vector<1x128xf32>
    %77 = arith.mulf %76, %75 : vector<1x128xf32>
    %78 = arith.addf %72, %77 : vector<1x128xf32>
    %c11 = arith.constant 11 : index
    %79 = memref.load %arg1[%c11] : memref<12xf32, #tpu.memory_space<smem>>
    %c3_42 = arith.constant 3 : index
    %c0_43 = arith.constant 0 : index
    %c0_44 = arith.constant 0 : index
    %80 = vector.load %arg3[%c3_42, %c0_43, %c0_44] : memref<7x1x128xf32, #tpu.memory_space<vmem>>, vector<1x1x128xf32>
    %81 = vector.shape_cast %80 : vector<1x1x128xf32> to vector<1x128xf32>
    %82 = vector.broadcast %79 : f32 to vector<1x128xf32>
    %83 = arith.mulf %82, %81 : vector<1x128xf32>
    %84 = arith.addf %78, %83 : vector<1x128xf32>
    %c6_45 = arith.constant 6 : index
    %c0_46 = arith.constant 0 : index
    %c0_47 = arith.constant 0 : index
    %85 = vector.load %arg3[%c6_45, %c0_46, %c0_47] : memref<7x1x128xf32, #tpu.memory_space<vmem>>, vector<1x1x128xf32>
    %86 = vector.shape_cast %85 : vector<1x1x128xf32> to vector<1x128xf32>
    %87 = arith.mulf %84, %86 : vector<1x128xf32>
    %88 = arith.addf %58, %87 : vector<1x128xf32>
    %c0_48 = arith.constant 0 : index
    %c0_49 = arith.constant 0 : index
    %89 = vector.load %arg4[%c0_48, %c0_49] : memref<1x128xf32, #tpu.memory_space<vmem>>, vector<1x128xf32>
    tpu.vector_store %arg4[%c0_48, %c0_49], %88 {strides = array<i32>} : memref<1x128xf32, #tpu.memory_space<vmem>>, vector<1x128xf32>,
    return
  }
  func.func @transform_0(%arg0: i32) -> i32 {
    %c0_i32 = arith.constant 0 : i32
    %c0_i32_0 = arith.constant 0 : i32
    return %c0_i32 : i32
  }
  func.func @transform_1(%arg0: i32) -> i32 {
    %c0_i32 = arith.constant 0 : i32
    %c0_i32_0 = arith.constant 0 : i32
    return %c0_i32 : i32
  }
  func.func @transform_2(%arg0: i32) -> (i32, i32, i32) {
    %c0_i32 = arith.constant 0 : i32
    %c0_i32_0 = arith.constant 0 : i32
    %c0_i32_1 = arith.constant 0 : i32
    return %c0_i32, %arg0, %c0_i32_0 : i32, i32, i32
  }
  func.func @transform_3(%arg0: i32) -> (i32, i32) {
    %c0_i32 = arith.constant 0 : i32
    %c0_i32_0 = arith.constant 0 : i32
    return %arg0, %c0_i32 : i32, i32
  }
}

</mosaic_0001>

<llo_original>
// kernel: modelc_forward.1
$region0: #{modelc_forward.1}
  #allocation0 [shape = 'u32[]', space=smem, size = 0x4, offset = 0x4, fixed_abs, tag = 'smem constant byte address 0x4 - core index']
  #allocation1 [shape = 'u32[144,128]{1,0:T(1,128)}', space=vmem, size = 0x12000, scoped, tag = 'internal scratch']
  %s0 = inlined_call_operand.vmem [shape: f32[12], index: 0, kind: input, shape index: {}]
  %s1 = inlined_call_operand.vmem [shape: f32[3], index: 1, kind: input, shape index: {}]
  %s2 = inlined_call_operand.vmem [shape: f32[7,1,128], index: 2, kind: input, shape index: {}]
  %s3 = inlined_call_operand.vmem [shape: f32[1,128], index: 3, kind: output, shape index: {}]
  %s4 = sld [smem:[#allocation0]]
  $region30: #{modelc_forward.1} parent=0
    _
  %s6 = ssub.s32 1, %s4
  %s7 = scalar_select 0, %s6, %s4
  $region1: #{modelc_forward.1} parent=0
    #allocation2 [shape = 'u8[512]{0}', space=smem, size = 0x200, scoped, tag = 'input window, operand 0, single buffered']
    #allocation3 [shape = 's32[1]{0}', space=sflag, size = 0x4, scoped, tag = 'scoped memory for modelc_forward.1']
    #allocation4 [shape = 'u8[512]{0}', space=smem, size = 0x200, scoped, tag = 'input window, operand 1, single buffered']
    #allocation5 [shape = 's32[1]{0}', space=sflag, size = 0x4, scoped, tag = 'scoped memory for modelc_forward.1']
    %8 = vsyncpa [#allocation3], 0
    %9 = vsyncpa [#allocation5], 0
    // Predicated region
    $region2: #{modelc_forward.1} parent=1 // pred_check
      _
    $region3: #{modelc_forward.1} parent=1 // pred_check_branch
      %11 = sbr.rel (0) target = $region5
    $region4: #{modelc_forward.1} parent=1 // pred_region
      %s13 = ssub.s32 16, 16
      %14 = vsyncadd [#allocation3], %s13
      %s16 = sshll.u32 %s0, 4
      %s17 = int_to_ptr.vmem [resolvable:$true] %s16
      %19 = dma.vmem_to_smem %s17, 16, [#allocation2], [#allocation3]
    $region5: #{modelc_forward.1} parent=1 // pred_fallthru
      _
    // Predicated region
    $region6: #{modelc_forward.1} parent=1 // pred_check
      _
    $region7: #{modelc_forward.1} parent=1 // pred_check_branch
      %21 = sbr.rel (0) target = $region9
    $region8: #{modelc_forward.1} parent=1 // pred_region
      %s23 = ssub.s32 16, 16
      %24 = vsyncadd [#allocation5], %s23
      %s26 = sshll.u32 %s1, 4
      %s27 = int_to_ptr.vmem [resolvable:$true] %s26
      %29 = dma.vmem_to_smem %s27, 16, [#allocation4], [#allocation5]
    $region9: #{modelc_forward.1} parent=1 // pred_fallthru
      _
    // Predicated region
    $region10: #{modelc_forward.1} parent=1 // pred_check
      _
    $region11: #{modelc_forward.1} parent=1 // pred_check_branch
      %31 = sbr.rel (0) target = $region13
    $region12: #{modelc_forward.1} parent=1 // pred_region
      _
    $region13: #{modelc_forward.1} parent=1 // pred_fallthru
      _
    // Predicated region
    $region14: #{modelc_forward.1} parent=1 // pred_check
      _
    $region15: #{modelc_forward.1} parent=1 // pred_check_branch
      %33 = sbr.rel (0) target = $region17
    $region16: #{modelc_forward.1} parent=1 // pred_region
      %34 = dma.done [#allocation3], 16
    $region17: #{modelc_forward.1} parent=1 // pred_fallthru
      _
    // Predicated region
    $region18: #{modelc_forward.1} parent=1 // pred_check
      _
    $region19: #{modelc_forward.1} parent=1 // pred_check_branch
      %36 = sbr.rel (0) target = $region21
    $region20: #{modelc_forward.1} parent=1 // pred_region
      %37 = dma.done [#allocation5], 16
    $region21: #{modelc_forward.1} parent=1 // pred_fallthru
      _
    %38 = sfence
    %s39 = sld [smem:[#allocation4]]
    %s40 = sld [smem:[#allocation2]]
    %v41 = vld [vmem:[%s2] sm:$0x1]
    %v42 = vstv %s40
    %v43 = vmul.f32 %v42, %v41
    %v44 = vstv %s39
    %v45 = vadd.f32 %v44, %v43
    %s46 = sld [smem:[#allocation2 + $0x3]]
    %s47 = scalar_lea.vmem %s2, 1
    %v48 = vld [vmem:[%s47] sm:$0x1]
    %v49 = vstv %s46
    %v50 = vmul.f32 %v49, %v48
    %v51 = vadd.f32 %v45, %v50
    %s52 = sld [smem:[#allocation2 + $0x6]]
    %s53 = scalar_lea.vmem %s2, 2
    %v54 = vld [vmem:[%s53] sm:$0x1]
    %v55 = vstv %s52
    %v56 = vmul.f32 %v55, %v54
    %v57 = vadd.f32 %v51, %v56
    %s58 = sld [smem:[#allocation2 + $0x9]]
    %s59 = scalar_lea.vmem %s2, 3
    %v60 = vld [vmem:[%s59] sm:$0x1]
    %v61 = vstv %s58
    %v62 = vmul.f32 %v61, %v60
    %v63 = vadd.f32 %v57, %v62
    %s64 = scalar_lea.vmem %s2, 4
    %v65 = vld [vmem:[%s64] sm:$0x1]
    %v66 = vmul.f32 %v63, %v65
    %s67 = sld [smem:[#allocation4 + $0x1]]
    %s68 = sld [smem:[#allocation2 + $0x1]]
    %v69 = vstv %s68
    %v70 = vmul.f32 %v69, %v41
    %v71 = vstv %s67
    %v72 = vadd.f32 %v71, %v70
    %s73 = sld [smem:[#allocation2 + $0x4]]
    %v74 = vstv %s73
    %v75 = vmul.f32 %v74, %v48
    %v76 = vadd.f32 %v72, %v75
    %s77 = sld [smem:[#allocation2 + $0x7]]
    %v78 = vstv %s77
    %v79 = vmul.f32 %v78, %v54
    %v80 = vadd.f32 %v76, %v79
    %s81 = sld [smem:[#allocation2 + $0xa]]
    %v82 = vstv %s81
    %v83 = vmul.f32 %v82, %v60
    %v84 = vadd.f32 %v80, %v83
    %s85 = scalar_lea.vmem %s2, 5
    %v86 = vld [vmem:[%s85] sm:$0x1]
    %v87 = vmul.f32 %v84, %v86
    %v88 = vadd.f32 %v66, %v87
    %s89 = sld [smem:[#allocation4 + $0x2]]
    %s90 = sld [smem:[#allocation2 + $0x2]]
    %v91 = vstv %s90
    %v92 = vmul.f32 %v91, %v41
    %v93 = vstv %s89
    %v94 = vadd.f32 %v93, %v92
    %s95 = sld [smem:[#allocation2 + $0x5]]
    %v96 = vstv %s95
    %v97 = vmul.f32 %v96, %v48
    %v98 = vadd.f32 %v94, %v97
    %s99 = sld [smem:[#allocation2 + $0x8]]
    %v100 = vstv %s99
    %v101 = vmul.f32 %v100, %v54
    %v102 = vadd.f32 %v98, %v101
    %s103 = sld [smem:[#allocation2 + $0xb]]
    %v104 = vstv %s103
    %v105 = vmul.f32 %v104, %v60
    %v106 = vadd.f32 %v102, %v105
    %s107 = scalar_lea.vmem %s2, 6
    %v108 = vld [vmem:[%s107] sm:$0x1]
    %v109 = vmul.f32 %v106, %v108
    %v110 = vadd.f32 %v88, %v109
    %111 = vst [vmem:[%s3] sm:$0x1] %v110
    // Predicated region
    $region22: #{modelc_forward.1} parent=1 // pred_check
      _
    $region23: #{modelc_forward.1} parent=1 // pred_check_branch
      %113 = sbr.rel (0) target = $region25
    $region24: #{modelc_forward.1} parent=1 // pred_region
      _
    $region25: #{modelc_forward.1} parent=1 // pred_fallthru
      _
    // Predicated region
    $region26: #{modelc_forward.1} parent=1 // pred_check
      _
    $region27: #{modelc_forward.1} parent=1 // pred_check_branch
      %115 = sbr.rel (0) target = $region29
    $region28: #{modelc_forward.1} parent=1 // pred_region
      _
    $region29: #{modelc_forward.1} parent=1 // pred_fallthru
      _
    %116 = vsyncpa [#allocation3], 1
    %117 = vsyncpa [#allocation5], 1

</llo_original>
